<compile_context>
chip_gen: v6e
topology: v6e:2x2x1
jax: 0.10.0
libtpu: 0.0.40
codegen_flags: <defaults>
</compile_context>

<pallas_src>
from functools import partial

import numpy as np
import jax
import jax.numpy as jnp
from jax.experimental import pallas as pl
from jax.experimental.pallas import tpu as pltpu


def _round_up(v, m):
    return ((v + m - 1) // m) * m


def _pick_tile(dim_pad, target):
    """Largest multiple of 128 <= target that divides dim_pad (dim_pad % 128 == 0)."""
    t = min(target, dim_pad)
    while dim_pad % t:
        t -= 128
    return t


# ------------------------------ kernels -------------------------------------


def _proj_kernel(x_ref, w_ref, b_ref, o_ref):
    # x_sum = x @ W1 + b1 ; bf16 operands, f32 MXU accumulation, bf16 result.
    o_ref[...] = (
        jnp.dot(x_ref[...], w_ref[...], preferred_element_type=jnp.float32)
        + b_ref[...]
    ).astype(o_ref.dtype)


def _agg_kernel(agg_ref, xs_ref, o_ref, acc_ref):
    # out = agg @ x_sum, tiled reduction over the node (k) axis.
    @pl.when(pl.program_id(1) == 0)
    def _():
        acc_ref[...] = jnp.zeros_like(acc_ref)

    acc_ref[...] += jnp.dot(agg_ref[...], xs_ref[...],
                            preferred_element_type=jnp.float32)

    @pl.when(pl.program_id(1) == pl.num_programs(1) - 1)
    def _():
        o_ref[...] = acc_ref[...].astype(o_ref.dtype)


# ------------------------------ wrapper --------------------------------------


@partial(jax.jit, static_argnames=("n_pad", "emb_pad", "hid_pad"))
def _gcn_conv_padded(x, w1_t, b1, row, col, *, n_pad, emb_pad, hid_pad):
    N, emb_dim = x.shape
    hidden_dim = w1_t.shape[1]

    # Pad + cast operands (bf16 matmul inputs, f32 bias / accumulation).
    x_p = jnp.zeros((n_pad, emb_pad), jnp.bfloat16).at[:N, :emb_dim].set(
        x.astype(jnp.bfloat16))
    w_p = jnp.zeros((emb_pad, hid_pad), jnp.bfloat16).at[:emb_dim, :hidden_dim].set(
        w1_t.astype(jnp.bfloat16))
    b_p = jnp.zeros((1, hid_pad), jnp.float32).at[0, :hidden_dim].set(b1)

    # Dense aggregation matrix built on device: agg[c, r] = #edges (row=r, col=c).
    # (bf16 is exact for counts <= 256 parallel edges; fine for molecular graphs.)
    agg_p = (jnp.zeros((n_pad, n_pad), jnp.float32)
             .at[col, row].add(1.0)
             .astype(jnp.bfloat16))

    # Tile sizes (multiples of 128, sized well under the 32 MiB scoped VMEM
    # default and v7x's 64 MiB physical VMEM even with double-buffering).
    tn = _pick_tile(n_pad, 256)   # projection row tile
    tm = _pick_tile(n_pad, 256)   # aggregation output-row tile
    tk = _pick_tile(n_pad, 512)   # aggregation reduction tile

    vmem_limit = 48 * 1024 * 1024

    # Kernel 1: x_sum = x @ W1 + b1, materialized once (not recomputed per tile).
    x_sum = pl.pallas_call(
        _proj_kernel,
        out_shape=jax.ShapeDtypeStruct((n_pad, hid_pad), jnp.bfloat16),
        grid=(n_pad // tn,),
        in_specs=[
            pl.BlockSpec((tn, emb_pad), lambda i: (i, 0)),
            pl.BlockSpec((emb_pad, hid_pad), lambda i: (0, 0)),
            pl.BlockSpec((1, hid_pad), lambda i: (0, 0)),
        ],
        out_specs=pl.BlockSpec((tn, hid_pad), lambda i: (i, 0)),
        compiler_params=pltpu.CompilerParams(
            dimension_semantics=("parallel",),
            vmem_limit_bytes=vmem_limit),
    )(x_p, w_p, b_p)

    # Kernel 2: out = agg @ x_sum, tiled reduction with f32 VMEM accumulator.
    out_p = pl.pallas_call(
        _agg_kernel,
        out_shape=jax.ShapeDtypeStruct((n_pad, hid_pad), jnp.float32),
        grid=(n_pad // tm, n_pad // tk),
        in_specs=[
            pl.BlockSpec((tm, tk), lambda i, k: (i, k)),
            pl.BlockSpec((tk, hid_pad), lambda i, k: (k, 0)),
        ],
        out_specs=pl.BlockSpec((tm, hid_pad), lambda i, k: (i, 0)),
        scratch_shapes=[pltpu.VMEM((tm, hid_pad), jnp.float32)],
        compiler_params=pltpu.CompilerParams(
            dimension_semantics=("parallel", "arbitrary"),
            vmem_limit_bytes=vmem_limit),
    )(agg_p, x_sum)

    return out_p


def gcn_conv_forward(x, edge_index, w1_t, b1):
    """Return path of GCNConv.forward.

    x: [N, emb_dim] f32, edge_index: [2, E] int, w1_t: [emb_dim, hidden] (= W1.T),
    b1: [hidden].  Returns [col.max()+1, hidden] f32 (scatter_sum dim_size=None).
    """
    N, emb_dim = x.shape
    hidden_dim = w1_t.shape[1]

    n_pad = _round_up(max(N, 8), 128)
    emb_pad = _round_up(emb_dim, 128)
    hid_pad = _round_up(hidden_dim, 128)

    row = edge_index[0].astype(jnp.int32)
    col = edge_index[1].astype(jnp.int32)

    out_p = _gcn_conv_padded(x, w1_t, b1, row, col,
                             n_pad=n_pad, emb_pad=emb_pad, hid_pad=hid_pad)

    # scatter_sum with dim_size=None sizes the output as int(index.max()) + 1;
    # the kernels compute on the fixed padded shape, this slice restores the
    # original module's contract without retracing/recompiling the kernels.
    num_out = int(jax.device_get(col).max()) + 1
    return out_p[:num_out, :hidden_dim]


if __name__ == "__main__":
    # Small shapes consistent with GCNConv(emb_dim, hidden_dim, rank_dim).
    emb_dim, hidden_dim, rank_dim = 32, 32, 8
    N, E = 16, 48

    key = jax.random.PRNGKey(0)
    k_x, k_row, k_col, k_w1, k_b1, k_ea = jax.random.split(key, 6)

    # Node features and a random edge list.
    x = jax.random.normal(k_x, (N, emb_dim), dtype=jnp.float32)
    row = jax.random.randint(k_row, (E,), 0, N, dtype=jnp.int32)
    col = jax.random.randint(k_col, (E,), 0, N, dtype=jnp.int32)
    edge_index = jnp.stack([row, col], axis=0)
    edge_attr = jax.random.normal(k_ea, (E, hidden_dim), dtype=jnp.float32)  # unused by return path

    # Deterministic parameter init mimicking torch.nn.Linear (uniform +/- 1/sqrt(fan_in)).
    bound = 1.0 / np.sqrt(emb_dim)
    w1_t = jax.random.uniform(k_w1, (emb_dim, hidden_dim), jnp.float32, -bound, bound)  # W1.T
    b1 = jax.random.uniform(k_b1, (hidden_dim,), jnp.float32, -bound, bound)
    # w2 / v / att1 / att2 / att_vec / root_emb exist in __init__ but never reach the
    # returned `rst = sum_agg`; x_prod / norm / gcn_norm / attention are dead code.
    # TODO(synk): scatter_product (reduce='multiply') aggregation not implemented since
    # the forward discards prod_agg.

    out = gcn_conv_forward(x, edge_index, w1_t, b1)
    out = jax.block_until_ready(out)

    # Reference applying the same bf16 operand quantization as the kernel
    # (f32 accumulation on both sides); otherwise identical to the module math.
    x_bf = x.astype(jnp.bfloat16).astype(jnp.float32)
    w_bf = w1_t.astype(jnp.bfloat16).astype(jnp.float32)
    x_sum_ref = (x_bf @ w_bf + b1[None, :]).astype(jnp.bfloat16).astype(jnp.float32)
    num_out = int(np.asarray(col).max()) + 1
    ref = jax.ops.segment_sum(x_sum_ref[row], col, num_segments=num_out)
    np.testing.assert_allclose(np.asarray(out), np.asarray(ref), rtol=2e-2, atol=2e-2)

    print("KERNEL_OK")
</pallas_src>

<mosaic_0001>
module attributes {stable_mosaic.version = 11 : i64} {
  func.func private @main(%arg0: i32) attributes {dimension_semantics = [#tpu.dimension_semantics<core_parallel>], iteration_bounds = array<i64: 2>, tpu.core_type = #tpu.core_type<sc_scalar_subcore>, window_params = []} {
    return
  }
}

module attributes {stable_mosaic.version = 11 : i64} {
  func.func private @main(%arg0: i32) attributes {dimension_semantics = [#tpu.dimension_semantics<core_parallel>], iteration_bounds = array<i64: 2>, tpu.core_type = #tpu.core_type<sc_scalar_subcore>, window_params = []} {
    return
  }
}

module attributes {stable_mosaic.version = 11 : i64} {
  func.func @_proj_kernel(%arg0: i32, %arg1: memref<128x128xbf16, #tpu.memory_space<vmem>>, %arg2: memref<128x128xbf16, #tpu.memory_space<vmem>>, %arg3: memref<1x128xf32, #tpu.memory_space<vmem>>, %arg4: memref<128x128xbf16, #tpu.memory_space<vmem>>) attributes {dimension_semantics = [#tpu.dimension_semantics<parallel>], iteration_bounds = array<i64: 1>, scalar_prefetch = 0 : i64, scratch_operands = 0 : i64, tpu.core_type = #tpu.core_type<tc>, window_params = [{transform_indices = @transform_0, window_bounds = array<i64: 128, 128>}, {pipeline_mode = #tpu.pipeline_mode<synchronous>, transform_indices = @transform_1, window_bounds = array<i64: 128, 128>}, {pipeline_mode = #tpu.pipeline_mode<synchronous>, transform_indices = @transform_2, window_bounds = array<i64: 1, 128>}, {transform_indices = @transform_3, window_bounds = array<i64: 128, 128>}]} {
    %c0 = arith.constant 0 : index
    %c0_0 = arith.constant 0 : index
    %0 = vector.load %arg1[%c0, %c0_0] : memref<128x128xbf16, #tpu.memory_space<vmem>>, vector<128x128xbf16>
    %c0_1 = arith.constant 0 : index
    %c0_2 = arith.constant 0 : index
    %1 = vector.load %arg2[%c0_1, %c0_2] : memref<128x128xbf16, #tpu.memory_space<vmem>>, vector<128x128xbf16>
    %cst = arith.constant dense<0.000000e+00> : vector<128x128xf32>
    %2 = tpu.matmul %0, %1, %cst {dimension_numbers = #tpu.dot_dimension_numbers<[1], [0], [0], [1], [0, 0, 1, 1], [], []>} : vector<128x128xbf16>, vector<128x128xbf16>, vector<128x128xf32> -> vector<128x128xf32>
    %c0_3 = arith.constant 0 : index
    %c0_4 = arith.constant 0 : index
    %3 = vector.load %arg3[%c0_3, %c0_4] : memref<1x128xf32, #tpu.memory_space<vmem>>, vector<1x128xf32>
    %4 = vector.broadcast %3 : vector<1x128xf32> to vector<128x128xf32>
    %5 = arith.addf %2, %4 : vector<128x128xf32>
    %6 = arith.truncf %5 : vector<128x128xf32> to vector<128x128xbf16>
    %c0_5 = arith.constant 0 : index
    %c0_6 = arith.constant 0 : index
    %7 = vector.load %arg4[%c0_5, %c0_6] : memref<128x128xbf16, #tpu.memory_space<vmem>>, vector<128x128xbf16>
    tpu.vector_store %arg4[%c0_5, %c0_6], %6 {strides = array<i32>} : memref<128x128xbf16, #tpu.memory_space<vmem>>, vector<128x128xbf16>,
    return
  }
  func.func @transform_0(%arg0: i32) -> (i32, i32) {
    %c0_i32 = arith.constant 0 : i32
    %c0_i32_0 = arith.constant 0 : i32
    return %arg0, %c0_i32 : i32, i32
  }
  func.func @transform_1(%arg0: i32) -> (i32, i32) {
    %c0_i32 = arith.constant 0 : i32
    %c0_i32_0 = arith.constant 0 : i32
    %c0_i32_1 = arith.constant 0 : i32
    return %c0_i32, %c0_i32_0 : i32, i32
  }
  func.func @transform_2(%arg0: i32) -> (i32, i32) {
    %c0_i32 = arith.constant 0 : i32
    %c0_i32_0 = arith.constant 0 : i32
    %c0_i32_1 = arith.constant 0 : i32
    return %c0_i32, %c0_i32_0 : i32, i32
  }
  func.func @transform_3(%arg0: i32) -> (i32, i32) {
    %c0_i32 = arith.constant 0 : i32
    %c0_i32_0 = arith.constant 0 : i32
    return %arg0, %c0_i32 : i32, i32
  }
}

module attributes {stable_mosaic.version = 11 : i64} {
  func.func @_agg_kernel(%arg0: i32, %arg1: i32, %arg2: memref<128x128xbf16, #tpu.memory_space<vmem>>, %arg3: memref<128x128xbf16, #tpu.memory_space<vmem>>, %arg4: memref<128x128xf32, #tpu.memory_space<vmem>>, %arg5: memref<128x128xf32, #tpu.memory_space<vmem>>) attributes {dimension_semantics = [#tpu.dimension_semantics<parallel>, #tpu.dimension_semantics<arbitrary>], iteration_bounds = array<i64: 1, 1>, scalar_prefetch = 0 : i64, scratch_operands = 1 : i64, tpu.core_type = #tpu.core_type<tc>, window_params = [{transform_indices = @transform_0, window_bounds = array<i64: 128, 128>}, {transform_indices = @transform_1, window_bounds = array<i64: 128, 128>}, {transform_indices = @transform_2, window_bounds = array<i64: 128, 128>}]} {
    %c0_i32 = arith.constant 0 : i32
    %0 = arith.cmpi eq, %arg1, %c0_i32 : i32
    %1 = arith.extui %0 : i1 to i32
    %c0_i32_0 = arith.constant 0 : i32
    %2 = arith.cmpi ne, %1, %c0_i32_0 : i32
    scf.if %2 {
      %cst_10 = arith.constant 0.000000e+00 : f32
      %12 = vector.broadcast %cst_10 : f32 to vector<128x128xf32>
      %c0_11 = arith.constant 0 : index
      %c0_12 = arith.constant 0 : index
      %13 = vector.load %arg5[%c0_11, %c0_12] : memref<128x128xf32, #tpu.memory_space<vmem>>, vector<128x128xf32>
      tpu.vector_store %arg5[%c0_11, %c0_12], %12 {strides = array<i32>} : memref<128x128xf32, #tpu.memory_space<vmem>>, vector<128x128xf32>,
    } else {
    }
    %c0 = arith.constant 0 : index
    %c0_1 = arith.constant 0 : index
    %3 = vector.load %arg5[%c0, %c0_1] : memref<128x128xf32, #tpu.memory_space<vmem>>, vector<128x128xf32>
    %c0_2 = arith.constant 0 : index
    %c0_3 = arith.constant 0 : index
    %4 = vector.load %arg2[%c0_2, %c0_3] : memref<128x128xbf16, #tpu.memory_space<vmem>>, vector<128x128xbf16>
    %c0_4 = arith.constant 0 : index
    %c0_5 = arith.constant 0 : index
    %5 = vector.load %arg3[%c0_4, %c0_5] : memref<128x128xbf16, #tpu.memory_space<vmem>>, vector<128x128xbf16>
    %cst = arith.constant dense<0.000000e+00> : vector<128x128xf32>
    %6 = tpu.matmul %4, %5, %cst {dimension_numbers = #tpu.dot_dimension_numbers<[1], [0], [0], [1], [0, 0, 1, 1], [], []>} : vector<128x128xbf16>, vector<128x128xbf16>, vector<128x128xf32> -> vector<128x128xf32>
    %7 = arith.addf %3, %6 : vector<128x128xf32>
    %c0_6 = arith.constant 0 : index
    %c0_7 = arith.constant 0 : index
    %8 = vector.load %arg5[%c0_6, %c0_7] : memref<128x128xf32, #tpu.memory_space<vmem>>, vector<128x128xf32>
    tpu.vector_store %arg5[%c0_6, %c0_7], %7 {strides = array<i32>} : memref<128x128xf32, #tpu.memory_space<vmem>>, vector<128x128xf32>,
    %c0_i32_8 = arith.constant 0 : i32
    %9 = arith.cmpi eq, %arg1, %c0_i32_8 : i32
    %10 = arith.extui %9 : i1 to i32
    %c0_i32_9 = arith.constant 0 : i32
    %11 = arith.cmpi ne, %10, %c0_i32_9 : i32
    scf.if %11 {
      %c0_10 = arith.constant 0 : index
      %c0_11 = arith.constant 0 : index
      %12 = vector.load %arg5[%c0_10, %c0_11] : memref<128x128xf32, #tpu.memory_space<vmem>>, vector<128x128xf32>
      %c0_12 = arith.constant 0 : index
      %c0_13 = arith.constant 0 : index
      %13 = vector.load %arg4[%c0_12, %c0_13] : memref<128x128xf32, #tpu.memory_space<vmem>>, vector<128x128xf32>
      tpu.vector_store %arg4[%c0_12, %c0_13], %12 {strides = array<i32>} : memref<128x128xf32, #tpu.memory_space<vmem>>, vector<128x128xf32>,
    } else {
    }
    return
  }
  func.func @transform_0(%arg0: i32, %arg1: i32) -> (i32, i32) {
    %c0_i32 = arith.constant 0 : i32
    return %arg0, %arg1 : i32, i32
  }
  func.func @transform_1(%arg0: i32, %arg1: i32) -> (i32, i32) {
    %c0_i32 = arith.constant 0 : i32
    %c0_i32_0 = arith.constant 0 : i32
    return %arg1, %c0_i32 : i32, i32
  }
  func.func @transform_2(%arg0: i32, %arg1: i32) -> (i32, i32) {
    %c0_i32 = arith.constant 0 : i32
    %c0_i32_0 = arith.constant 0 : i32
    return %arg0, %c0_i32 : i32, i32
  }
}

</mosaic_0001>

<llo_original>
// kernel: _gcn_conv_padded.2
$region0: #{_gcn_conv_padded.2}
  #allocation0 [shape = 'u32[]', space=smem, size = 0x4, offset = 0x4, fixed_abs, tag = 'smem constant byte address 0x4 - core index']
  #allocation1 [shape = 'u32[144,128]{1,0:T(1,128)}', space=vmem, size = 0x12000, scoped, tag = 'internal scratch']
  %s0 = inlined_call_operand.vmem [shape: bf16[128,128], index: 0, kind: input, shape index: {}]
  %s1 = inlined_call_operand.vmem [shape: bf16[128,128], index: 1, kind: input, shape index: {}]
  %s2 = inlined_call_operand.vmem [shape: f32[1,128], index: 2, kind: input, shape index: {}]
  %s3 = inlined_call_operand.vmem [shape: bf16[128,128], index: 3, kind: output, shape index: {}]
  %s4 = sld [smem:[#allocation0]]
  $region22: #{_gcn_conv_padded.2} parent=0
    _
  %s6 = ssub.s32 1, %s4
  %s7 = scalar_select 0, %s6, %s4
  // Predicated region
  $region2: #{_gcn_conv_padded.2} parent=0 // pred_check
    _
  $region3: #{_gcn_conv_padded.2} parent=0 // pred_check_branch
    %9 = sbr.rel (0) target = $region5
  $region4: #{_gcn_conv_padded.2} parent=0 // pred_region
    _
  $region5: #{_gcn_conv_padded.2} parent=0 // pred_fallthru
    _
  // Predicated region
  $region6: #{_gcn_conv_padded.2} parent=0 // pred_check
    _
  $region7: #{_gcn_conv_padded.2} parent=0 // pred_check_branch
    %11 = sbr.rel (0) target = $region9
  $region8: #{_gcn_conv_padded.2} parent=0 // pred_region
    _
  $region9: #{_gcn_conv_padded.2} parent=0 // pred_fallthru
    _
  // Predicated region
  $region10: #{_gcn_conv_padded.2} parent=0 // pred_check
    _
  $region11: #{_gcn_conv_padded.2} parent=0 // pred_check_branch
    %13 = sbr.rel (0) target = $region13
  $region12: #{_gcn_conv_padded.2} parent=0 // pred_region
    _
  $region13: #{_gcn_conv_padded.2} parent=0 // pred_fallthru
    _
  %v15 = vld [vmem:[%s0] sm:$0xf]
  %v16 = vld [vmem:[%s0 + $0x4] sm:$0xf]
  %v17 = vld [vmem:[%s0 + $0x8] sm:$0xf]
  %v18 = vld [vmem:[%s0 + $0xc] sm:$0xf]
  %v19 = vld [vmem:[%s0 + $0x10] sm:$0xf]
  %v20 = vld [vmem:[%s0 + $0x14] sm:$0xf]
  %v21 = vld [vmem:[%s0 + $0x18] sm:$0xf]
  %v22 = vld [vmem:[%s0 + $0x1c] sm:$0xf]
  %v23 = vld [vmem:[%s0 + $0x20] sm:$0xf]
  %v24 = vld [vmem:[%s0 + $0x24] sm:$0xf]
  %v25 = vld [vmem:[%s0 + $0x28] sm:$0xf]
  %v26 = vld [vmem:[%s0 + $0x2c] sm:$0xf]
  %v27 = vld [vmem:[%s0 + $0x30] sm:$0xf]
  %v28 = vld [vmem:[%s0 + $0x34] sm:$0xf]
  %v29 = vld [vmem:[%s0 + $0x38] sm:$0xf]
  %v30 = vld [vmem:[%s0 + $0x3c] sm:$0xf]
  %v31 = vld [vmem:[%s1] sm:$0xf]
  %v32 = vld [vmem:[%s1 + $0x4] sm:$0xf]
  %v33 = vld [vmem:[%s1 + $0x8] sm:$0xf]
  %v34 = vld [vmem:[%s1 + $0xc] sm:$0xf]
  %v35 = vld [vmem:[%s1 + $0x10] sm:$0xf]
  %v36 = vld [vmem:[%s1 + $0x14] sm:$0xf]
  %v37 = vld [vmem:[%s1 + $0x18] sm:$0xf]
  %v38 = vld [vmem:[%s1 + $0x1c] sm:$0xf]
  %v39 = vld [vmem:[%s1 + $0x20] sm:$0xf]
  %v40 = vld [vmem:[%s1 + $0x24] sm:$0xf]
  %v41 = vld [vmem:[%s1 + $0x28] sm:$0xf]
  %v42 = vld [vmem:[%s1 + $0x2c] sm:$0xf]
  %v43 = vld [vmem:[%s1 + $0x30] sm:$0xf]
  %v44 = vld [vmem:[%s1 + $0x34] sm:$0xf]
  %v45 = vld [vmem:[%s1 + $0x38] sm:$0xf]
  %v46 = vld [vmem:[%s1 + $0x3c] sm:$0xf]
  %v47 = vld [vmem:[%s2] sm:$0x1]
  %v49 = vlaneseq
  %v50 = vshrl.u32 %v49, 7
  %v51 = vsub.s32 0, %v50
  %v52 = vrot.slane %v47, %v51
  %v70 = vunpack.c.l.b16 %v15
  %v71 = vunpack.c.l.b16 %v16
  %v72 = vunpack.c.l.b16 %v17
  %v73 = vunpack.c.l.b16 %v18
  %v74 = vunpack.c.l.b16 %v19
  %v75 = vunpack.c.l.b16 %v20
  %v76 = vunpack.c.l.b16 %v21
  %v77 = vunpack.c.l.b16 %v22
  %v78 = vunpack.c.l.b16 %v23
  %v79 = vunpack.c.l.b16 %v24
  %v80 = vunpack.c.l.b16 %v25
  %v81 = vunpack.c.l.b16 %v26
  %v82 = vunpack.c.l.b16 %v27
  %v83 = vunpack.c.l.b16 %v28
  %v84 = vunpack.c.l.b16 %v29
  %v85 = vunpack.c.l.b16 %v30
  %v86 = vpack.c.b16 %v71, %v70
  %v87 = vpack.c.b16 %v73, %v72
  %v88 = vpack.c.b16 %v75, %v74
  %v89 = vpack.c.b16 %v77, %v76
  %v90 = vpack.c.b16 %v79, %v78
  %v91 = vpack.c.b16 %v81, %v80
  %v92 = vpack.c.b16 %v83, %v82
  %v93 = vpack.c.b16 %v85, %v84
  %v118 = vunpack.c.l.b16 %v31
  %v119 = vunpack.c.l.b16 %v32
  %v120 = vunpack.c.l.b16 %v33
  %v121 = vunpack.c.l.b16 %v34
  %v122 = vunpack.c.l.b16 %v35
  %v123 = vunpack.c.l.b16 %v36
  %v124 = vunpack.c.l.b16 %v37
  %v125 = vunpack.c.l.b16 %v38
  %v126 = vunpack.c.l.b16 %v39
  %v127 = vunpack.c.l.b16 %v40
  %v128 = vunpack.c.l.b16 %v41
  %v129 = vunpack.c.l.b16 %v42
  %v130 = vunpack.c.l.b16 %v43
  %v131 = vunpack.c.l.b16 %v44
  %v132 = vunpack.c.l.b16 %v45
  %v133 = vunpack.c.l.b16 %v46
  %v134 = vpack.c.b16 %v119, %v118
  %v135 = vpack.c.b16 %v121, %v120
  %v136 = vpack.c.b16 %v123, %v122
  %v137 = vpack.c.b16 %v125, %v124
  %v138 = vpack.c.b16 %v127, %v126
  %v139 = vpack.c.b16 %v129, %v128
  %v140 = vpack.c.b16 %v131, %v130
  %v141 = vpack.c.b16 %v133, %v132
  %150 = vmatprep.subr.bf16.mxu0 0
  %151 = vmatpush1.bf16.msra.mxu0 %v141
  %152 = vmatprep.subr.bf16.mxu0 0
  %153 = vmatpush1.bf16.msra.mxu0 %v140
  %154 = vmatprep.subr.bf16.mxu0 0
  %155 = vmatpush1.bf16.msra.mxu0 %v139
  %156 = vmatprep.subr.bf16.mxu0 0
  %157 = vmatpush1.bf16.msra.mxu0 %v138
  %158 = vmatprep.subr.bf16.mxu0 0
  %159 = vmatpush1.bf16.msra.mxu0 %v137
  %160 = vmatprep.subr.bf16.mxu0 0
  %161 = vmatpush1.bf16.msra.mxu0 %v136
  %162 = vmatprep.subr.bf16.mxu0 0
  %163 = vmatpush1.bf16.msra.mxu0 %v135
  %164 = vmatprep.subr.bf16.mxu0 0
  %165 = vmatpush1.bf16.msra.mxu0 %v134
  %166 = vmatprep.subr.bf16.mxu0 0
  %167 = vmatpush2.bf16.msra.mxu0 0
  %168 = vmatprep.subr.bf16.mxu0 0
  %169 = vmatpush2.bf16.msra.mxu0 0
  %170 = vmatprep.subr.bf16.mxu0 0
  %171 = vmatpush2.bf16.msra.mxu0 0
  %172 = vmatprep.subr.bf16.mxu0 0
  %173 = vmatpush2.bf16.msra.mxu0 0
  %174 = vmatprep.subr.bf16.mxu0 0
  %175 = vmatpush2.bf16.msra.mxu0 0
  %176 = vmatprep.subr.bf16.mxu0 0
  %177 = vmatpush2.bf16.msra.mxu0 0
  %178 = vmatprep.subr.bf16.mxu0 0
  %179 = vmatpush2.bf16.msra.mxu0 0
  %180 = vmatprep.subr.bf16.mxu0 0
  %181 = vmatpush2.bf16.msra.mxu0 0
  %182 = vmatprep.mubr.bf16.mxu0 0
  %183 = vmatmul.mubr.bf16.gmra.mxu0 %v86
  %v184 = vpop.f32.mrf.mxu0
  %v185 = vadd.f32 %v52, %v184
  %v186 = vpop.f32.mrf.mxu0
  %v187 = vpop.f32.mrf.mxu0
  %v188 = vadd.f32 %v52, %v187
  %v189 = vpop.f32.mrf.mxu0
  %190 = vmatprep.mubr.bf16.mxu0 0
  %191 = vmatmul.mubr.bf16.gmra.mxu0 %v87
  %v192 = vpop.f32.mrf.mxu0
  %v193 = vadd.f32 %v52, %v192
  %v194 = vpop.f32.mrf.mxu0
  %v195 = vpop.f32.mrf.mxu0
  %v196 = vadd.f32 %v52, %v195
  %v197 = vpop.f32.mrf.mxu0
  %198 = vmatprep.mubr.bf16.mxu0 0
  %199 = vmatmul.mubr.bf16.gmra.mxu0 %v88
  %v200 = vpop.f32.mrf.mxu0
  %v201 = vadd.f32 %v52, %v200
  %v202 = vpop.f32.mrf.mxu0
  %v203 = vpop.f32.mrf.mxu0
  %v204 = vadd.f32 %v52, %v203
  %v205 = vpop.f32.mrf.mxu0
  %206 = vmatprep.mubr.bf16.mxu0 0
  %207 = vmatmul.mubr.bf16.gmra.mxu0 %v89
  %v208 = vpop.f32.mrf.mxu0
  %v209 = vadd.f32 %v52, %v208
  %v210 = vpop.f32.mrf.mxu0
  %v211 = vpop.f32.mrf.mxu0
  %v212 = vadd.f32 %v52, %v211
  %v213 = vpop.f32.mrf.mxu0
  %214 = vmatprep.mubr.bf16.mxu0 0
  %215 = vmatmul.mubr.bf16.gmra.mxu0 %v90
  %v216 = vpop.f32.mrf.mxu0
  %v217 = vadd.f32 %v52, %v216
  %v218 = vpop.f32.mrf.mxu0
  %v219 = vpop.f32.mrf.mxu0
  %v220 = vadd.f32 %v52, %v219
  %v221 = vpop.f32.mrf.mxu0
  %222 = vmatprep.mubr.bf16.mxu0 0
  %223 = vmatmul.mubr.bf16.gmra.mxu0 %v91
  %v224 = vpop.f32.mrf.mxu0
  %v225 = vadd.f32 %v52, %v224
  %v226 = vpop.f32.mrf.mxu0
  %v227 = vpop.f32.mrf.mxu0
  %v228 = vadd.f32 %v52, %v227
  %v229 = vpop.f32.mrf.mxu0
  %230 = vmatprep.mubr.bf16.mxu0 0
  %231 = vmatmul.mubr.bf16.gmra.mxu0 %v92
  %v232 = vpop.f32.mrf.mxu0
  %v233 = vadd.f32 %v52, %v232
  %v234 = vpop.f32.mrf.mxu0
  %v235 = vpop.f32.mrf.mxu0
  %v236 = vadd.f32 %v52, %v235
  %v237 = vpop.f32.mrf.mxu0
  %238 = vmatprep.mubr.bf16.mxu0 0
  %239 = vmatmul.mubr.bf16.gmra.mxu0 %v93
  %v240 = vpop.f32.mrf.mxu0
  %v241 = vadd.f32 %v52, %v240
  %v242 = vpop.f32.mrf.mxu0
  %v243 = vpop.f32.mrf.mxu0
  %v244 = vadd.f32 %v52, %v243
  %v245 = vpop.f32.mrf.mxu0
  %246 = vdwg.mxu0
  %v247 = vpack.c.bf16 %v188, %v185
  %v248 = vpack.c.bf16 %v196, %v193
  %v249 = vpack.c.bf16 %v204, %v201
  %v250 = vpack.c.bf16 %v212, %v209
  %v251 = vpack.c.bf16 %v220, %v217
  %v252 = vpack.c.bf16 %v228, %v225
  %v253 = vpack.c.bf16 %v236, %v233
  %v254 = vpack.c.bf16 %v244, %v241
  %v263 = vunpack.c.l.b16 %v247
  %v264 = vunpack.c.h.b16 %v247
  %v265 = vunpack.c.l.b16 %v248
  %v266 = vunpack.c.h.b16 %v248
  %v267 = vunpack.c.l.b16 %v249
  %v268 = vunpack.c.h.b16 %v249
  %v269 = vunpack.c.l.b16 %v250
  %v270 = vunpack.c.h.b16 %v250
  %v271 = vunpack.c.l.b16 %v251
  %v272 = vunpack.c.h.b16 %v251
  %v273 = vunpack.c.l.b16 %v252
  %v274 = vunpack.c.h.b16 %v252
  %v275 = vunpack.c.l.b16 %v253
  %v276 = vunpack.c.h.b16 %v253
  %v277 = vunpack.c.l.b16 %v254
  %v278 = vunpack.c.h.b16 %v254
  %v279 = vpack.c.b16 %v263, %v263
  %v280 = vpack.c.b16 %v264, %v264
  %v281 = vpack.c.b16 %v265, %v265
  %v282 = vpack.c.b16 %v266, %v266
  %v283 = vpack.c.b16 %v267, %v267
  %v284 = vpack.c.b16 %v268, %v268
  %v285 = vpack.c.b16 %v269, %v269
  %v286 = vpack.c.b16 %v270, %v270
  %v287 = vpack.c.b16 %v271, %v271
  %v288 = vpack.c.b16 %v272, %v272
  %v289 = vpack.c.b16 %v273, %v273
  %v290 = vpack.c.b16 %v274, %v274
  %v291 = vpack.c.b16 %v275, %v275
  %v292 = vpack.c.b16 %v276, %v276
  %v293 = vpack.c.b16 %v277, %v277
  %v294 = vpack.c.b16 %v278, %v278
  %311 = vst [vmem:[%s3] sm:$0xf] %v279
  %312 = vst [vmem:[%s3 + $0x4] sm:$0xf] %v280
  %313 = vst [vmem:[%s3 + $0x8] sm:$0xf] %v281
  %314 = vst [vmem:[%s3 + $0xc] sm:$0xf] %v282
  %315 = vst [vmem:[%s3 + $0x10] sm:$0xf] %v283
  %316 = vst [vmem:[%s3 + $0x14] sm:$0xf] %v284
  %317 = vst [vmem:[%s3 + $0x18] sm:$0xf] %v285
  %318 = vst [vmem:[%s3 + $0x1c] sm:$0xf] %v286
  %319 = vst [vmem:[%s3 + $0x20] sm:$0xf] %v287
  %320 = vst [vmem:[%s3 + $0x24] sm:$0xf] %v288
  %321 = vst [vmem:[%s3 + $0x28] sm:$0xf] %v289
  %322 = vst [vmem:[%s3 + $0x2c] sm:$0xf] %v290
  %323 = vst [vmem:[%s3 + $0x30] sm:$0xf] %v291
  %324 = vst [vmem:[%s3 + $0x34] sm:$0xf] %v292
  %325 = vst [vmem:[%s3 + $0x38] sm:$0xf] %v293
  %326 = vst [vmem:[%s3 + $0x3c] sm:$0xf] %v294
  // Predicated region
  $region14: #{_gcn_conv_padded.2} parent=0 // pred_check
    _
  $region15: #{_gcn_conv_padded.2} parent=0 // pred_check_branch
    %328 = sbr.rel (0) target = $region17
  $region16: #{_gcn_conv_padded.2} parent=0 // pred_region
    _
  $region17: #{_gcn_conv_padded.2} parent=0 // pred_fallthru
    _
  // Predicated region
  $region18: #{_gcn_conv_padded.2} parent=0 // pred_check
    _
  $region19: #{_gcn_conv_padded.2} parent=0 // pred_check_branch
    %330 = sbr.rel (0) target = $region21
  $region20: #{_gcn_conv_padded.2} parent=0 // pred_region
    _
  $region21: #{_gcn_conv_padded.2} parent=0 // pred_fallthru
    _

// kernel: _gcn_conv_padded.3
$region0: #{_gcn_conv_padded.3}
  #allocation0 [shape = 'u32[]', space=smem, size = 0x4, offset = 0x4, fixed_abs, tag = 'smem constant byte address 0x4 - core index']
  #allocation1 [shape = 'u32[144,128]{1,0:T(1,128)}', space=vmem, size = 0x12000, scoped, tag = 'internal scratch']
  #allocation2 [shape = 'f32[128,128]{1,0:T(8,128)}', space=vmem, size = 0x10000, scoped, tag = 'scratch operand']
  %s0 = inlined_call_operand.vmem [shape: bf16[128,128], index: 0, kind: input, shape index: {}]
  %s1 = inlined_call_operand.vmem [shape: bf16[128,128], index: 1, kind: input, shape index: {}]
  %s2 = inlined_call_operand.hbm [shape: f32[128,128], index: 2, kind: output, shape index: {}]
  %s3 = sld [smem:[#allocation0]]
  $region26: #{_gcn_conv_padded.3} parent=0
    _
  %s5 = ssub.s32 1, %s3
  %s6 = scalar_select 0, %s5, %s3
  $region1: #{_gcn_conv_padded.3} parent=0
    #allocation3 [shape = 'u8[65536]{0}', space=vmem, size = 0x10000, scoped, tag = 'output window, operand 0, single buffered']
    #allocation4 [shape = 's32[1]{0}', space=sflag, size = 0x4, scoped, tag = 'scoped memory for _gcn_conv_padded.3']
    %7 = vsyncpa [#allocation4], 0
    // Predicated region
    $region2: #{_gcn_conv_padded.3} parent=1 // pred_check
      _
    $region3: #{_gcn_conv_padded.3} parent=1 // pred_check_branch
      %9 = sbr.rel (0) target = $region5
    $region4: #{_gcn_conv_padded.3} parent=1 // pred_region
      _
    $region5: #{_gcn_conv_padded.3} parent=1 // pred_fallthru
      _
    // Predicated region
    $region6: #{_gcn_conv_padded.3} parent=1 // pred_check
      _
    $region7: #{_gcn_conv_padded.3} parent=1 // pred_check_branch
      %11 = sbr.rel (0) target = $region9
    $region8: #{_gcn_conv_padded.3} parent=1 // pred_region
      _
    $region9: #{_gcn_conv_padded.3} parent=1 // pred_fallthru
      _
    %p13 = scmp.eq.s32.totalorder 0, 0
    // Predicated region
    $region10: #{_gcn_conv_padded.3} parent=1 // pred_check
      %p14 = pneg %p13
    $region11: #{_gcn_conv_padded.3} parent=1 // pred_check_branch
      %16 = sbr.rel (%p14) target = $region13
    $region12: #{_gcn_conv_padded.3} parent=1 // pred_region
      %17 = vst [vmem:[#allocation2] sm:$0xff] 0.0
      %18 = vst [vmem:[#allocation2 + $0x8] sm:$0xff] 0.0
      %19 = vst [vmem:[#allocation2 + $0x10] sm:$0xff] 0.0
      %20 = vst [vmem:[#allocation2 + $0x18] sm:$0xff] 0.0
      %21 = vst [vmem:[#allocation2 + $0x20] sm:$0xff] 0.0
      %22 = vst [vmem:[#allocation2 + $0x28] sm:$0xff] 0.0
      %23 = vst [vmem:[#allocation2 + $0x30] sm:$0xff] 0.0
      %24 = vst [vmem:[#allocation2 + $0x38] sm:$0xff] 0.0
      %25 = vst [vmem:[#allocation2 + $0x40] sm:$0xff] 0.0
      %26 = vst [vmem:[#allocation2 + $0x48] sm:$0xff] 0.0
      %27 = vst [vmem:[#allocation2 + $0x50] sm:$0xff] 0.0
      %28 = vst [vmem:[#allocation2 + $0x58] sm:$0xff] 0.0
      %29 = vst [vmem:[#allocation2 + $0x60] sm:$0xff] 0.0
      %30 = vst [vmem:[#allocation2 + $0x68] sm:$0xff] 0.0
      %31 = vst [vmem:[#allocation2 + $0x70] sm:$0xff] 0.0
      %32 = vst [vmem:[#allocation2 + $0x78] sm:$0xff] 0.0
    $region13: #{_gcn_conv_padded.3} parent=1 // pred_fallthru
      _
    %v33 = vld [vmem:[#allocation2] sm:$0xff]
    %v34 = vld [vmem:[#allocation2 + $0x8] sm:$0xff]
    %v35 = vld [vmem:[#allocation2 + $0x10] sm:$0xff]
    %v36 = vld [vmem:[#allocation2 + $0x18] sm:$0xff]
    %v37 = vld [vmem:[#allocation2 + $0x20] sm:$0xff]
    %v38 = vld [vmem:[#allocation2 + $0x28] sm:$0xff]
    %v39 = vld [vmem:[#allocation2 + $0x30] sm:$0xff]
    %v40 = vld [vmem:[#allocation2 + $0x38] sm:$0xff]
    %v41 = vld [vmem:[#allocation2 + $0x40] sm:$0xff]
    %v42 = vld [vmem:[#allocation2 + $0x48] sm:$0xff]
    %v43 = vld [vmem:[#allocation2 + $0x50] sm:$0xff]
    %v44 = vld [vmem:[#allocation2 + $0x58] sm:$0xff]
    %v45 = vld [vmem:[#allocation2 + $0x60] sm:$0xff]
    %v46 = vld [vmem:[#allocation2 + $0x68] sm:$0xff]
    %v47 = vld [vmem:[#allocation2 + $0x70] sm:$0xff]
    %v48 = vld [vmem:[#allocation2 + $0x78] sm:$0xff]
    %v49 = vld [vmem:[%s0] sm:$0xf]
    %v50 = vld [vmem:[%s0 + $0x4] sm:$0xf]
    %v51 = vld [vmem:[%s0 + $0x8] sm:$0xf]
    %v52 = vld [vmem:[%s0 + $0xc] sm:$0xf]
    %v53 = vld [vmem:[%s0 + $0x10] sm:$0xf]
    %v54 = vld [vmem:[%s0 + $0x14] sm:$0xf]
    %v55 = vld [vmem:[%s0 + $0x18] sm:$0xf]
    %v56 = vld [vmem:[%s0 + $0x1c] sm:$0xf]
    %v57 = vld [vmem:[%s0 + $0x20] sm:$0xf]
    %v58 = vld [vmem:[%s0 + $0x24] sm:$0xf]
    %v59 = vld [vmem:[%s0 + $0x28] sm:$0xf]
    %v60 = vld [vmem:[%s0 + $0x2c] sm:$0xf]
    %v61 = vld [vmem:[%s0 + $0x30] sm:$0xf]
    %v62 = vld [vmem:[%s0 + $0x34] sm:$0xf]
    %v63 = vld [vmem:[%s0 + $0x38] sm:$0xf]
    %v64 = vld [vmem:[%s0 + $0x3c] sm:$0xf]
    %v65 = vld [vmem:[%s1] sm:$0xf]
    %v66 = vld [vmem:[%s1 + $0x4] sm:$0xf]
    %v67 = vld [vmem:[%s1 + $0x8] sm:$0xf]
    %v68 = vld [vmem:[%s1 + $0xc] sm:$0xf]
    %v69 = vld [vmem:[%s1 + $0x10] sm:$0xf]
    %v70 = vld [vmem:[%s1 + $0x14] sm:$0xf]
    %v71 = vld [vmem:[%s1 + $0x18] sm:$0xf]
    %v72 = vld [vmem:[%s1 + $0x1c] sm:$0xf]
    %v73 = vld [vmem:[%s1 + $0x20] sm:$0xf]
    %v74 = vld [vmem:[%s1 + $0x24] sm:$0xf]
    %v75 = vld [vmem:[%s1 + $0x28] sm:$0xf]
    %v76 = vld [vmem:[%s1 + $0x2c] sm:$0xf]
    %v77 = vld [vmem:[%s1 + $0x30] sm:$0xf]
    %v78 = vld [vmem:[%s1 + $0x34] sm:$0xf]
    %v79 = vld [vmem:[%s1 + $0x38] sm:$0xf]
    %v80 = vld [vmem:[%s1 + $0x3c] sm:$0xf]
    %v97 = vunpack.c.l.b16 %v49
    %v98 = vunpack.c.l.b16 %v50
    %v99 = vunpack.c.l.b16 %v51
    %v100 = vunpack.c.l.b16 %v52
    %v101 = vunpack.c.l.b16 %v53
    %v102 = vunpack.c.l.b16 %v54
    %v103 = vunpack.c.l.b16 %v55
    %v104 = vunpack.c.l.b16 %v56
    %v105 = vunpack.c.l.b16 %v57
    %v106 = vunpack.c.l.b16 %v58
    %v107 = vunpack.c.l.b16 %v59
    %v108 = vunpack.c.l.b16 %v60
    %v109 = vunpack.c.l.b16 %v61
    %v110 = vunpack.c.l.b16 %v62
    %v111 = vunpack.c.l.b16 %v63
    %v112 = vunpack.c.l.b16 %v64
    %v113 = vpack.c.b16 %v98, %v97
    %v114 = vpack.c.b16 %v100, %v99
    %v115 = vpack.c.b16 %v102, %v101
    %v116 = vpack.c.b16 %v104, %v103
    %v117 = vpack.c.b16 %v106, %v105
    %v118 = vpack.c.b16 %v108, %v107
    %v119 = vpack.c.b16 %v110, %v109
    %v120 = vpack.c.b16 %v112, %v111
    %v145 = vunpack.c.l.b16 %v65
    %v146 = vunpack.c.l.b16 %v66
    %v147 = vunpack.c.l.b16 %v67
    %v148 = vunpack.c.l.b16 %v68
    %v149 = vunpack.c.l.b16 %v69
    %v150 = vunpack.c.l.b16 %v70
    %v151 = vunpack.c.l.b16 %v71
    %v152 = vunpack.c.l.b16 %v72
    %v153 = vunpack.c.l.b16 %v73
    %v154 = vunpack.c.l.b16 %v74
    %v155 = vunpack.c.l.b16 %v75
    %v156 = vunpack.c.l.b16 %v76
    %v157 = vunpack.c.l.b16 %v77
    %v158 = vunpack.c.l.b16 %v78
    %v159 = vunpack.c.l.b16 %v79
    %v160 = vunpack.c.l.b16 %v80
    %v161 = vpack.c.b16 %v146, %v145
    %v162 = vpack.c.b16 %v148, %v147
    %v163 = vpack.c.b16 %v150, %v149
    %v164 = vpack.c.b16 %v152, %v151
    %v165 = vpack.c.b16 %v154, %v153
    %v166 = vpack.c.b16 %v156, %v155
    %v167 = vpack.c.b16 %v158, %v157
    %v168 = vpack.c.b16 %v160, %v159
    %177 = vmatprep.subr.bf16.mxu0 0
    %178 = vmatpush1.bf16.msra.mxu0 %v168
    %179 = vmatprep.subr.bf16.mxu0 0
    %180 = vmatpush1.bf16.msra.mxu0 %v167
    %181 = vmatprep.subr.bf16.mxu0 0
    %182 = vmatpush1.bf16.msra.mxu0 %v166
    %183 = vmatprep.subr.bf16.mxu0 0
    %184 = vmatpush1.bf16.msra.mxu0 %v165
    %185 = vmatprep.subr.bf16.mxu0 0
    %186 = vmatpush1.bf16.msra.mxu0 %v164
    %187 = vmatprep.subr.bf16.mxu0 0
    %188 = vmatpush1.bf16.msra.mxu0 %v163
    %189 = vmatprep.subr.bf16.mxu0 0
    %190 = vmatpush1.bf16.msra.mxu0 %v162
    %191 = vmatprep.subr.bf16.mxu0 0
    %192 = vmatpush1.bf16.msra.mxu0 %v161
    %193 = vmatprep.subr.bf16.mxu0 0
    %194 = vmatpush2.bf16.msra.mxu0 0
    %195 = vmatprep.subr.bf16.mxu0 0
    %196 = vmatpush2.bf16.msra.mxu0 0
    %197 = vmatprep.subr.bf16.mxu0 0
    %198 = vmatpush2.bf16.msra.mxu0 0
    %199 = vmatprep.subr.bf16.mxu0 0
    %200 = vmatpush2.bf16.msra.mxu0 0
    %201 = vmatprep.subr.bf16.mxu0 0
    %202 = vmatpush2.bf16.msra.mxu0 0
    %203 = vmatprep.subr.bf16.mxu0 0
    %204 = vmatpush2.bf16.msra.mxu0 0
    %205 = vmatprep.subr.bf16.mxu0 0
    %206 = vmatpush2.bf16.msra.mxu0 0
    %207 = vmatprep.subr.bf16.mxu0 0
    %208 = vmatpush2.bf16.msra.mxu0 0
    %209 = vmatprep.mubr.bf16.mxu0 0
    %210 = vmatmul.mubr.bf16.gmra.mxu0 %v113
    %v211 = vpop.f32.mrf.mxu0
    %v212 = vadd.f32 0.0, %v211
    %v213 = vpop.f32.mrf.mxu0
    %v214 = vpop.f32.mrf.mxu0
    %v215 = vadd.f32 0.0, %v214
    %v216 = vpop.f32.mrf.mxu0
    %217 = vmatprep.mubr.bf16.mxu0 0
    %218 = vmatmul.mubr.bf16.gmra.mxu0 %v114
    %v219 = vpop.f32.mrf.mxu0
    %v220 = vadd.f32 0.0, %v219
    %v221 = vpop.f32.mrf.mxu0
    %v222 = vpop.f32.mrf.mxu0
    %v223 = vadd.f32 0.0, %v222
    %v224 = vpop.f32.mrf.mxu0
    %225 = vmatprep.mubr.bf16.mxu0 0
    %226 = vmatmul.mubr.bf16.gmra.mxu0 %v115
    %v227 = vpop.f32.mrf.mxu0
    %v228 = vadd.f32 0.0, %v227
    %v229 = vpop.f32.mrf.mxu0
    %v230 = vpop.f32.mrf.mxu0
    %v231 = vadd.f32 0.0, %v230
    %v232 = vpop.f32.mrf.mxu0
    %233 = vmatprep.mubr.bf16.mxu0 0
    %234 = vmatmul.mubr.bf16.gmra.mxu0 %v116
    %v235 = vpop.f32.mrf.mxu0
    %v236 = vadd.f32 0.0, %v235
    %v237 = vpop.f32.mrf.mxu0
    %v238 = vpop.f32.mrf.mxu0
    %v239 = vadd.f32 0.0, %v238
    %v240 = vpop.f32.mrf.mxu0
    %241 = vmatprep.mubr.bf16.mxu0 0
    %242 = vmatmul.mubr.bf16.gmra.mxu0 %v117
    %v243 = vpop.f32.mrf.mxu0
    %v244 = vadd.f32 0.0, %v243
    %v245 = vpop.f32.mrf.mxu0
    %v246 = vpop.f32.mrf.mxu0
    %v247 = vadd.f32 0.0, %v246
    %v248 = vpop.f32.mrf.mxu0
    %249 = vmatprep.mubr.bf16.mxu0 0
    %250 = vmatmul.mubr.bf16.gmra.mxu0 %v118
    %v251 = vpop.f32.mrf.mxu0
    %v252 = vadd.f32 0.0, %v251
    %v253 = vpop.f32.mrf.mxu0
    %v254 = vpop.f32.mrf.mxu0
    %v255 = vadd.f32 0.0, %v254
    %v256 = vpop.f32.mrf.mxu0
    %257 = vmatprep.mubr.bf16.mxu0 0
    %258 = vmatmul.mubr.bf16.gmra.mxu0 %v119
    %v259 = vpop.f32.mrf.mxu0
    %v260 = vadd.f32 0.0, %v259
    %v261 = vpop.f32.mrf.mxu0
    %v262 = vpop.f32.mrf.mxu0
    %v263 = vadd.f32 0.0, %v262
    %v264 = vpop.f32.mrf.mxu0
    %265 = vmatprep.mubr.bf16.mxu0 0
    %266 = vmatmul.mubr.bf16.gmra.mxu0 %v120
    %v267 = vpop.f32.mrf.mxu0
    %v268 = vadd.f32 0.0, %v267
    %v269 = vpop.f32.mrf.mxu0
    %v270 = vpop.f32.mrf.mxu0
    %v271 = vadd.f32 0.0, %v270
    %v272 = vpop.f32.mrf.mxu0
    %273 = vdwg.mxu0
    %v274 = vadd.f32 %v33, %v212
    %v275 = vadd.f32 %v34, %v215
    %v276 = vadd.f32 %v35, %v220
    %v277 = vadd.f32 %v36, %v223
    %v278 = vadd.f32 %v37, %v228
    %v279 = vadd.f32 %v38, %v231
    %v280 = vadd.f32 %v39, %v236
    %v281 = vadd.f32 %v40, %v239
    %v282 = vadd.f32 %v41, %v244
    %v283 = vadd.f32 %v42, %v247
    %v284 = vadd.f32 %v43, %v252
    %v285 = vadd.f32 %v44, %v255
    %v286 = vadd.f32 %v45, %v260
    %v287 = vadd.f32 %v46, %v263
    %v288 = vadd.f32 %v47, %v268
    %v289 = vadd.f32 %v48, %v271
    %290 = vst [vmem:[#allocation2] sm:$0xff] %v274
    %291 = vst [vmem:[#allocation2 + $0x8] sm:$0xff] %v275
    %292 = vst [vmem:[#allocation2 + $0x10] sm:$0xff] %v276
    %293 = vst [vmem:[#allocation2 + $0x18] sm:$0xff] %v277
    %294 = vst [vmem:[#allocation2 + $0x20] sm:$0xff] %v278
    %295 = vst [vmem:[#allocation2 + $0x28] sm:$0xff] %v279
    %296 = vst [vmem:[#allocation2 + $0x30] sm:$0xff] %v280
    %297 = vst [vmem:[#allocation2 + $0x38] sm:$0xff] %v281
    %298 = vst [vmem:[#allocation2 + $0x40] sm:$0xff] %v282
    %299 = vst [vmem:[#allocation2 + $0x48] sm:$0xff] %v283
    %300 = vst [vmem:[#allocation2 + $0x50] sm:$0xff] %v284
    %301 = vst [vmem:[#allocation2 + $0x58] sm:$0xff] %v285
    %302 = vst [vmem:[#allocation2 + $0x60] sm:$0xff] %v286
    %303 = vst [vmem:[#allocation2 + $0x68] sm:$0xff] %v287
    %304 = vst [vmem:[#allocation2 + $0x70] sm:$0xff] %v288
    %305 = vst [vmem:[#allocation2 + $0x78] sm:$0xff] %v289
    // Predicated region
    $region14: #{_gcn_conv_padded.3} parent=1 // pred_check
      %p306 = pneg %p13
    $region15: #{_gcn_conv_padded.3} parent=1 // pred_check_branch
      %308 = sbr.rel (%p306) target = $region17
    $region16: #{_gcn_conv_padded.3} parent=1 // pred_region
      %v309 = vld [vmem:[#allocation2] sm:$0xff]
      %v310 = vld [vmem:[#allocation2 + $0x8] sm:$0xff]
      %v311 = vld [vmem:[#allocation2 + $0x10] sm:$0xff]
      %v312 = vld [vmem:[#allocation2 + $0x18] sm:$0xff]
      %v313 = vld [vmem:[#allocation2 + $0x20] sm:$0xff]
      %v314 = vld [vmem:[#allocation2 + $0x28] sm:$0xff]
      %v315 = vld [vmem:[#allocation2 + $0x30] sm:$0xff]
      %v316 = vld [vmem:[#allocation2 + $0x38] sm:$0xff]
      %v317 = vld [vmem:[#allocation2 + $0x40] sm:$0xff]
      %v318 = vld [vmem:[#allocation2 + $0x48] sm:$0xff]
      %v319 = vld [vmem:[#allocation2 + $0x50] sm:$0xff]
      %v320 = vld [vmem:[#allocation2 + $0x58] sm:$0xff]
      %v321 = vld [vmem:[#allocation2 + $0x60] sm:$0xff]
      %v322 = vld [vmem:[#allocation2 + $0x68] sm:$0xff]
      %v323 = vld [vmem:[#allocation2 + $0x70] sm:$0xff]
      %v324 = vld [vmem:[#allocation2 + $0x78] sm:$0xff]
      %325 = vst [vmem:[#allocation3] sm:$0xff] %v309
      %326 = vst [vmem:[#allocation3 + $0x8] sm:$0xff] %v310
      %327 = vst [vmem:[#allocation3 + $0x10] sm:$0xff] %v311
      %328 = vst [vmem:[#allocation3 + $0x18] sm:$0xff] %v312
      %329 = vst [vmem:[#allocation3 + $0x20] sm:$0xff] %v313
      %330 = vst [vmem:[#allocation3 + $0x28] sm:$0xff] %v314
      %331 = vst [vmem:[#allocation3 + $0x30] sm:$0xff] %v315
      %332 = vst [vmem:[#allocation3 + $0x38] sm:$0xff] %v316
      %333 = vst [vmem:[#allocation3 + $0x40] sm:$0xff] %v317
      %334 = vst [vmem:[#allocation3 + $0x48] sm:$0xff] %v318
      %335 = vst [vmem:[#allocation3 + $0x50] sm:$0xff] %v319
      %336 = vst [vmem:[#allocation3 + $0x58] sm:$0xff] %v320
      %337 = vst [vmem:[#allocation3 + $0x60] sm:$0xff] %v321
      %338 = vst [vmem:[#allocation3 + $0x68] sm:$0xff] %v322
      %339 = vst [vmem:[#allocation3 + $0x70] sm:$0xff] %v323
      %340 = vst [vmem:[#allocation3 + $0x78] sm:$0xff] %v324
    $region17: #{_gcn_conv_padded.3} parent=1 // pred_fallthru
      _
    // Predicated region
    $region18: #{_gcn_conv_padded.3} parent=1 // pred_check
      _
    $region19: #{_gcn_conv_padded.3} parent=1 // pred_check_branch
      %342 = sbr.rel (0) target = $region21
    $region20: #{_gcn_conv_padded.3} parent=1 // pred_region
      %s344 = ssub.s32 2048, 2048
      %345 = vsyncadd [#allocation4], %s344
      %s346 = sshll.u32 [#allocation3], 4
      %s347 = int_to_ptr.vmem [resolvable:$true] %s346
      %352 = dma.vmem_to_hbm [thread:$0]  %s347, 2048, %s2, [#allocation4], 128, 128, 8
    $region21: #{_gcn_conv_padded.3} parent=1 // pred_fallthru
      _
    // Predicated region
    $region22: #{_gcn_conv_padded.3} parent=1 // pred_check
      _
    $region23: #{_gcn_conv_padded.3} parent=1 // pred_check_branch
      %354 = sbr.rel (0) target = $region25
    $region24: #{_gcn_conv_padded.3} parent=1 // pred_region
      %355 = dma.done [#allocation4], 2048
    $region25: #{_gcn_conv_padded.3} parent=1 // pred_fallthru
      _
    %356 = vsyncpa [#allocation4], 1

</llo_original>
